<compile_context>
chip_gen: v7x
topology: tpu7x:2x2x1
jax: 0.10.0
libtpu: 0.0.40
codegen_flags: <defaults>
</compile_context>

<pallas_src>
import functools
import math

import jax
import jax.numpy as jnp
import numpy as np
from jax.experimental import pallas as pl
from jax.experimental.pallas import tpu as pltpu


def _round_up(x, m):
    return ((x + m - 1) // m) * m


def _default_num_splits():
    """2 grid splits only on megacore chips (2 TensorCores per device); else 1."""
    try:
        kind = jax.devices()[0].device_kind.lower()
    except Exception:
        return 1
    return 2 if any(tag in kind for tag in ("v4", "v5p", "v7")) else 1


# ----------------------------------------------------------------------------
# shared elementwise math (kernels AND the pure-JAX reference use the same
# formulas, so the numerical check compares identical arithmetic)
# ----------------------------------------------------------------------------
def _focal_elements(logits, targets, alpha, gamma):
    """Sigmoid focal loss (reduction='none') for BOOLEAN one-hot targets.

    Mathematically identical to the PyTorch reference for targets in {0,1};
    boolean selects replace multiplies by the binary target (fewer VALU ops).
    A single transcendental exp feeds both the stable BCE term and the sigmoid.
    """
    z = jnp.exp(-jnp.abs(logits))
    p = jnp.where(logits >= 0.0, 1.0, z) / (1.0 + z)                # sigmoid(logits)
    ce = jnp.maximum(logits, 0.0) - jnp.where(targets, logits, 0.0) + jnp.log1p(z)
    one_minus_pt = jnp.where(targets, 1.0 - p, p)
    if gamma == 2.0:
        mod = one_minus_pt * one_minus_pt
    else:
        mod = jnp.power(one_minus_pt, gamma)
    loss = ce * mod
    if alpha >= 0:
        loss = loss * jnp.where(targets, alpha, 1.0 - alpha)
    return loss


def _giou_rowwise_cm(pred_cm, tgt_cm):
    """Row-wise GIoU; boxes coordinate-major (4, K) xyxy -> (1, K) (lane-dense)."""
    px1, py1, px2, py2 = pred_cm[0:1], pred_cm[1:2], pred_cm[2:3], pred_cm[3:4]
    tx1, ty1, tx2, ty2 = tgt_cm[0:1], tgt_cm[1:2], tgt_cm[2:3], tgt_cm[3:4]
    area_p = (px2 - px1) * (py2 - py1)
    area_t = (tx2 - tx1) * (ty2 - ty1)
    iw = jnp.maximum(jnp.minimum(px2, tx2) - jnp.maximum(px1, tx1), 0.0)
    ih = jnp.maximum(jnp.minimum(py2, ty2) - jnp.maximum(py1, ty1), 0.0)
    inter = iw * ih
    union = area_p + area_t - inter
    # NOTE: no epsilon, matching the PyTorch reference; degenerate boxes -> NaN.
    iou = inter / union
    cw = jnp.maximum(px2, tx2) - jnp.minimum(px1, tx1)
    ch = jnp.maximum(py2, ty2) - jnp.minimum(py1, ty1)
    area_c = cw * ch
    return iou - (area_c - union) / area_c


def _pairwise_iou_cm(b_cm, gt):
    """IoU matrix. b_cm: (4, M) coordinate-major xyxy; gt: (G, 4) xyxy -> (G, M)."""
    x11, y11, x12, y12 = b_cm[0:1], b_cm[1:2], b_cm[2:3], b_cm[3:4]      # (1, M)
    x21, y21, x22, y22 = gt[:, 0:1], gt[:, 1:2], gt[:, 2:3], gt[:, 3:4]   # (G, 1)
    area1 = (x12 - x11) * (y12 - y11)
    area2 = (x22 - x21) * (y22 - y21)
    iw = jnp.maximum(jnp.minimum(x12, x22) - jnp.maximum(x11, x21), 0.0)
    ih = jnp.maximum(jnp.minimum(y12, y22) - jnp.maximum(y11, y21), 0.0)
    inter = iw * ih
    union = area1 + area2 - inter
    return inter / union


def box_cxcywh_to_xyxy(b):
    cx, cy, w, h = b[..., 0], b[..., 1], b[..., 2], b[..., 3]
    return jnp.stack([cx - 0.5 * w, cy - 0.5 * h, cx + 0.5 * w, cy + 0.5 * h], axis=-1)


# ----------------------------------------------------------------------------
# Pallas kernels
# ----------------------------------------------------------------------------
def _focal_sum_kernel(logits_ref, enc_ref, expand_ref, cls_ref, out_ref, *, alpha, gamma):
    """Grid (splits, tiles).  Per step:
       logits_ref : (tile_r, row_len) f32  -- row_len = pack*C lanes (pack anchors / row)
       enc_ref    : (tile_r, pack)    f32  -- per-anchor code: 0 = excluded, label+2 otherwise
       expand_ref : (pack, row_len)   f32  -- constant 0/1 anchor -> lane expansion matrix
       cls_ref    : (1, row_len)      f32  -- constant per-lane (class id + 2)
       out_ref    : (1, row_len)      f32  -- per-split lane-partial sums (resident accumulator)
    """
    step = pl.program_id(1)

    @pl.when(step == 0)
    def _init():
        out_ref[...] = jnp.zeros_like(out_ref)

    x = logits_ref[...].astype(jnp.float32)
    # Expand the per-anchor code across its C lanes on the (otherwise idle) MXU.
    enc_exp = jnp.dot(enc_ref[...], expand_ref[...], preferred_element_type=jnp.float32)
    targets = enc_exp == cls_ref[...]          # in-kernel one-hot (bool)
    valid = enc_exp > 0.5                      # anchor participates in the loss

    loss = _focal_elements(x, targets, alpha, gamma)
    # where (not *) so padded / out-of-range edge rows can never poison the sum;
    # sublane (XLU) reduce keeps the resident accumulator a single vreg row.
    out_ref[...] += jnp.sum(jnp.where(valid, loss, 0.0), axis=0, keepdims=True)


def _giou_loss_kernel(pred_ref, tgt_ref, valid_ref, out_ref):
    giou = _giou_rowwise_cm(pred_ref[...], tgt_ref[...])        # (1, Kpad)
    out_ref[...] = (1.0 - giou) * valid_ref[...]


def _batched_iou_kernel(pred_cm_ref, anchor_cm_ref, gt_ref, max_iou_ref, a_iou_ref):
    n_imgs = pred_cm_ref.shape[0]                 # static -> unrolled (all images / step)
    anchor_cm = anchor_cm_ref[...]                # (4, T)
    for b in range(n_imgs):
        gt = gt_ref[b]                                            # (G, 4)
        iou_p = _pairwise_iou_cm(pred_cm_ref[b], gt)              # (G, T)
        max_iou_ref[b] = jnp.max(iou_p, axis=0, keepdims=True)    # (1, T)
        a_iou_ref[b] = _pairwise_iou_cm(anchor_cm, gt)            # (G, T)


# ----------------------------------------------------------------------------
# Pallas wrappers
# ----------------------------------------------------------------------------
def focal_loss_sum(logits, gt_cls, valid, *, alpha, gamma,
                   num_splits=None, target_block_bytes=4 * 1024 * 1024):
    """Sum of sigmoid focal loss over anchors with valid=True.

    logits: (N, C) float;  gt_cls: (N,) int32 in [-1, C];  valid: (N,) bool.
    """
    N, C = logits.shape
    if num_splits is None:
        num_splits = _default_num_splits()

    pack = 128 // math.gcd(C, 128)                 # anchors per 128-lane-aligned row
    row_len = pack * C

    # per-anchor scalar code: 0 -> excluded, label+2 -> class id (label may be C = background)
    enc = jnp.where(valid, gt_cls.astype(jnp.float32) + 2.0, 0.0)

    # Zero-copy lane-dense view of the logits: (N, C) -> (N//pack, pack*C).
    # Only pathological N sizes hit the (tiny) pad-copy below.
    n_pad = _round_up(N, pack)
    if n_pad // pack < 8:
        n_pad = 8 * pack
    if n_pad != N:
        logits = jnp.pad(logits, ((0, n_pad - N), (0, 0)))
        enc = jnp.pad(enc, (0, n_pad - N))
    r_tot = n_pad // pack
    logits2 = logits.reshape(r_tot, row_len)

    # Large row blocks (~target_block_bytes of logits / step) amortize the per-step
    # overhead; the split axis feeds the two TensorCores on megacore chips.
    rows_need = pl.cdiv(r_tot, num_splits)
    max_tile_r = max(8, (target_block_bytes // (row_len * 4)) // 8 * 8)
    tile_r = min(max_tile_r, _round_up(rows_need, 8), (r_tot // 8) * 8)
    tiles_per_split = pl.cdiv(rows_need, tile_r)
    r_cov = num_splits * tiles_per_split * tile_r

    # enc covers the full (possibly overshooting) grid extent with explicit zeros, so
    # edge blocks of the logits stream are always masked regardless of what an
    # out-of-range block read returns.
    enc_full = jnp.zeros((r_cov, pack), jnp.float32).at[:r_tot, :].set(enc.reshape(r_tot, pack))

    lane = np.arange(row_len)
    expand_mat = jnp.asarray((lane[None, :] // C == np.arange(pack)[:, None]).astype(np.float32))
    cls_code = jnp.asarray((lane % C + 2).astype(np.float32)[None, :])

    kernel = functools.partial(_focal_sum_kernel, alpha=alpha, gamma=gamma)
    row_map = lambda s, i: (s * tiles_per_split + i, 0)
    const_map = lambda s, i: (0, 0)

    out = pl.pallas_call(
        kernel,
        out_shape=jax.ShapeDtypeStruct((1, num_splits * row_len), jnp.float32),
        grid_spec=pltpu.PrefetchScalarGridSpec(
            num_scalar_prefetch=0,
            grid=(num_splits, tiles_per_split),
            in_specs=[
                pl.BlockSpec((tile_r, row_len), row_map),    # logits stream (only big input)
                pl.BlockSpec((tile_r, pack), row_map),       # per-anchor codes
                pl.BlockSpec((pack, row_len), const_map),    # constant expansion matrix
                pl.BlockSpec((1, row_len), const_map),       # constant per-lane class code
            ],
            out_specs=pl.BlockSpec((1, row_len), lambda s, i: (0, s)),
        ),
        compiler_params=pltpu.CompilerParams(
            dimension_semantics=("parallel", "arbitrary"),
            vmem_limit_bytes=32 * 1024 * 1024,
        ),
    )(logits2, enc_full, expand_mat, cls_code)
    return jnp.sum(out)


def giou_loss_sum(pred_box, tgt_box, box_valid):
    """Sum of (1 - GIoU(pred_i, tgt_i)) over rows with box_valid=1 (tiny one-step kernel)."""
    K = pred_box.shape[0]
    k_pad = _round_up(max(K, 1), 128)
    dummy = jnp.array([[0.0], [0.0], [1.0], [1.0]], jnp.float32)    # unit boxes keep padding finite
    pred_cm = jnp.tile(dummy, (1, k_pad)).at[:, :K].set(pred_box.T.astype(jnp.float32))
    tgt_cm = jnp.tile(dummy, (1, k_pad)).at[:, :K].set(tgt_box.T.astype(jnp.float32))
    val = jnp.zeros((1, k_pad), jnp.float32).at[0, :K].set(box_valid.astype(jnp.float32))
    out = pl.pallas_call(
        _giou_loss_kernel,
        out_shape=jax.ShapeDtypeStruct((1, k_pad), jnp.float32),
    )(pred_cm, tgt_cm, val)
    return jnp.sum(out)


def batched_pairwise_iou(pred_box, anchor_xyxy, gt_boxes, *, max_tile_m=2048):
    """One launch for all images: max-over-gt IoU of preds (B, M) and anchor-vs-gt IoU (B, G, Mp)."""
    B, M, _ = pred_box.shape
    G = gt_boxes.shape[1]
    tile_m = min(_round_up(M, 128), max_tile_m)
    m_pad = _round_up(M, tile_m)
    n_tiles = m_pad // tile_m

    # coordinate-major, padded to a 128-lane multiple with unit dummy boxes (NaN-free padding)
    dummy = jnp.array([0.0, 0.0, 1.0, 1.0], jnp.float32)
    pred_cm = jnp.broadcast_to(dummy[None, :, None], (B, 4, m_pad))
    pred_cm = pred_cm.at[:, :, :M].set(jnp.transpose(pred_box, (0, 2, 1)).astype(jnp.float32))
    anchor_cm = jnp.broadcast_to(dummy[:, None], (4, m_pad))
    anchor_cm = anchor_cm.at[:, :M].set(anchor_xyxy.T.astype(jnp.float32))

    max_iou, a_iou = pl.pallas_call(
        _batched_iou_kernel,
        out_shape=(jax.ShapeDtypeStruct((B, 1, m_pad), jnp.float32),
                   jax.ShapeDtypeStruct((B, G, m_pad), jnp.float32)),
        grid_spec=pltpu.PrefetchScalarGridSpec(
            num_scalar_prefetch=0,
            grid=(n_tiles,),
            in_specs=[pl.BlockSpec((B, 4, tile_m), lambda j: (0, 0, j)),
                      pl.BlockSpec((4, tile_m), lambda j: (0, j)),
                      pl.BlockSpec((B, G, 4), lambda j: (0, 0, 0))],
            out_specs=[pl.BlockSpec((B, 1, tile_m), lambda j: (0, 0, j)),
                       pl.BlockSpec((B, G, tile_m), lambda j: (0, 0, j))],
        ),
        compiler_params=pltpu.CompilerParams(dimension_semantics=("parallel",)),
    )(pred_cm, anchor_cm, gt_boxes.astype(jnp.float32))
    return max_iou[:, 0, :M], a_iou


# ----------------------------------------------------------------------------
# pure-JAX reference versions (numerical checking)
# ----------------------------------------------------------------------------
def _focal_sum_ref(logits, gt_cls, valid, *, alpha, gamma):
    C = logits.shape[1]
    targets = jnp.arange(C, dtype=jnp.int32)[None, :] == gt_cls[:, None]
    loss = _focal_elements(logits.astype(jnp.float32), targets, alpha, gamma)
    return jnp.sum(jnp.where(valid[:, None], loss, 0.0))


def _giou_sum_ref(pred_box, tgt_box, box_valid):
    giou = _giou_rowwise_cm(pred_box.T.astype(jnp.float32), tgt_box.T.astype(jnp.float32))[0]
    return jnp.sum((1.0 - giou) * box_valid.astype(jnp.float32))


def _batched_iou_ref(pred_box, anchor_xyxy, gt_boxes):
    anchor_cm = anchor_xyxy.T.astype(jnp.float32)

    def one(pb, gb):
        iou_p = _pairwise_iou_cm(pb.T.astype(jnp.float32), gb.astype(jnp.float32))
        iou_a = _pairwise_iou_cm(anchor_cm, gb.astype(jnp.float32))
        return jnp.max(iou_p, axis=0), iou_a

    return jax.vmap(one)(pred_box, gt_boxes)


# ----------------------------------------------------------------------------
# Criterion forward
# ----------------------------------------------------------------------------
def criterion_forward(pred_cls, pred_box, mask, anchor_boxes,
                      gt_boxes, gt_labels, indices_src, indices_tgt,
                      *, cfg, alpha=0.25, gamma=2.0,
                      loss_cls_weight=1.0, loss_reg_weight=1.0,
                      num_classes=16, use_pallas=True):
    B, M, C = pred_cls.shape
    assert C == num_classes
    N = B * M

    anchor_xyxy = box_cxcywh_to_xyxy(anchor_boxes)                        # (M, 4)

    if use_pallas:
        max_iou, a_iou = batched_pairwise_iou(pred_box, anchor_xyxy, gt_boxes)
    else:
        max_iou, a_iou = _batched_iou_ref(pred_box, anchor_xyxy, gt_boxes)

    batch_idx = jnp.arange(B, dtype=jnp.int32)[:, None]

    ious = max_iou.reshape(-1)                                            # (N,)
    pos_ious = a_iou[batch_idx, indices_tgt, indices_src].reshape(-1)     # (B*Kp,)

    ignore_idx = ious > cfg['igt']
    pos_ignore_idx = pos_ious < cfg['iou_t']

    src_idx_flat = (indices_src + batch_idx * M).reshape(-1)

    gt_cls = jnp.full((N,), num_classes, dtype=jnp.int32)
    gt_cls = jnp.where(ignore_idx, -1, gt_cls)
    tgt_cls_o = gt_labels[batch_idx, indices_tgt].reshape(-1)
    tgt_cls_o = jnp.where(pos_ignore_idx, -1, tgt_cls_o)
    # TODO(synk): duplicate matched anchors have unspecified which-write-wins semantics
    # (true for both torch indexing and JAX .at[].set); synthetic matches are duplicate-free.
    gt_cls = gt_cls.at[src_idx_flat].set(tgt_cls_o)

    foreground = (gt_cls >= 0) & (gt_cls != num_classes)
    num_foreground = jnp.maximum(foreground.sum().astype(jnp.float32), 1.0)

    valid = (gt_cls >= 0) & mask.reshape(-1)                              # (N,) bool

    tgt_boxes_all = gt_boxes[batch_idx, indices_tgt].reshape(-1, 4)       # (K, 4)
    matched_pred_box = pred_box.reshape(-1, 4)[src_idx_flat]              # (K, 4)
    box_valid = (~pos_ignore_idx).astype(jnp.float32)                     # (K,)

    pred_cls_flat = pred_cls.reshape(-1, C)
    if use_pallas:
        cls_sum = focal_loss_sum(pred_cls_flat, gt_cls, valid, alpha=alpha, gamma=gamma)
        box_sum = giou_loss_sum(matched_pred_box, tgt_boxes_all, box_valid)
    else:
        cls_sum = _focal_sum_ref(pred_cls_flat, gt_cls, valid, alpha=alpha, gamma=gamma)
        box_sum = _giou_sum_ref(matched_pred_box, tgt_boxes_all, box_valid)

    loss_labels = cls_sum / num_foreground
    loss_bboxes = box_sum / num_foreground
    losses = loss_cls_weight * loss_labels + loss_reg_weight * loss_bboxes
    return loss_labels, loss_bboxes, losses


# ----------------------------------------------------------------------------
# main
# ----------------------------------------------------------------------------
if __name__ == "__main__":
    key = jax.random.PRNGKey(0)
    B, M, C, G, topk = 2, 64, 16, 4, 4
    cfg = {'topk': topk, 'igt': 0.7, 'iou_t': 0.15}

    k1, k2, k3, k4, k5 = jax.random.split(key, 5)

    pred_cls = jax.random.normal(k1, (B, M, C), dtype=jnp.float32)

    def rand_boxes(k, shape):
        cx = jax.random.uniform(k, shape + (1,), minval=0.2, maxval=0.8)
        cy = jax.random.uniform(jax.random.fold_in(k, 1), shape + (1,), minval=0.2, maxval=0.8)
        w = jax.random.uniform(jax.random.fold_in(k, 2), shape + (1,), minval=0.1, maxval=0.3)
        h = jax.random.uniform(jax.random.fold_in(k, 3), shape + (1,), minval=0.1, maxval=0.3)
        cxcywh = jnp.concatenate([cx, cy, w, h], axis=-1)
        return box_cxcywh_to_xyxy(cxcywh).astype(jnp.float32)

    pred_box = rand_boxes(k2, (B, M))                       # [B, M, 4] xyxy
    gt_boxes = rand_boxes(k3, (B, G))                       # [B, G, 4] xyxy
    gt_labels = jax.random.randint(k4, (B, G), 0, C, dtype=jnp.int32)
    mask = jax.random.uniform(k5, (B, M)) > 0.1             # [B, M] bool

    # anchors: regular 8x8 grid of cxcywh boxes
    gx, gy = jnp.meshgrid(jnp.linspace(0.1, 0.9, 8), jnp.linspace(0.1, 0.9, 8))
    anchor_boxes = jnp.stack(
        [gx.reshape(-1), gy.reshape(-1),
         jnp.full((M,), 0.2), jnp.full((M,), 0.2)], axis=-1).astype(jnp.float32)

    # TODO(synk): UniformMatcher not provided; deterministic synthetic matching.
    Kp = G * topk
    indices_src = jnp.stack(
        [(jnp.arange(Kp, dtype=jnp.int32) * 7 + i) % M for i in range(B)])      # [B, Kp]
    indices_tgt = jnp.stack(
        [jnp.repeat(jnp.arange(G, dtype=jnp.int32), topk) for _ in range(B)])   # [B, Kp]

    run = functools.partial(
        criterion_forward,
        cfg=cfg, alpha=0.25, gamma=2.0,
        loss_cls_weight=1.0, loss_reg_weight=1.0, num_classes=C)

    loss_labels, loss_bboxes, losses = run(
        pred_cls, pred_box, mask, anchor_boxes, gt_boxes, gt_labels,
        indices_src, indices_tgt, use_pallas=True)
    jax.block_until_ready((loss_labels, loss_bboxes, losses))

    # pure-JAX reference check
    ref_labels, ref_bboxes, ref_losses = run(
        pred_cls, pred_box, mask, anchor_boxes, gt_boxes, gt_labels,
        indices_src, indices_tgt, use_pallas=False)
    jax.block_until_ready((ref_labels, ref_bboxes, ref_losses))

    np.testing.assert_allclose(np.array(loss_labels), np.array(ref_labels), rtol=1e-4, atol=1e-5)
    np.testing.assert_allclose(np.array(loss_bboxes), np.array(ref_bboxes), rtol=1e-4, atol=1e-5)
    np.testing.assert_allclose(np.array(losses), np.array(ref_losses), rtol=1e-4, atol=1e-5)

    print("KERNEL_OK")
</pallas_src>

<mosaic_0001>
module attributes {stable_mosaic.version = 11 : i64} {
  func.func @_batched_iou_kernel(%arg0: i32, %arg1: memref<2x4x128xf32, #tpu.memory_space<vmem>>, %arg2: memref<4x128xf32, #tpu.memory_space<vmem>>, %arg3: memref<2x4x4xf32, #tpu.memory_space<vmem>>, %arg4: memref<2x1x128xf32, #tpu.memory_space<vmem>>, %arg5: memref<2x4x128xf32, #tpu.memory_space<vmem>>) attributes {dimension_semantics = [#tpu.dimension_semantics<parallel>], iteration_bounds = array<i64: 1>, scalar_prefetch = 0 : i64, scratch_operands = 0 : i64, tpu.core_type = #tpu.core_type<tc>, window_params = [{transform_indices = @transform_0, window_bounds = array<i64: 2, 4, 128>}, {transform_indices = @transform_1, window_bounds = array<i64: 4, 128>}, {pipeline_mode = #tpu.pipeline_mode<synchronous>, transform_indices = @transform_2, window_bounds = array<i64: 2, 4, 4>}, {transform_indices = @transform_3, window_bounds = array<i64: 2, 1, 128>}, {transform_indices = @transform_4, window_bounds = array<i64: 2, 4, 128>}]} {
    %c0 = arith.constant 0 : index
    %c0_0 = arith.constant 0 : index
    %0 = vector.load %arg2[%c0, %c0_0] : memref<4x128xf32, #tpu.memory_space<vmem>>, vector<4x128xf32>
    %c0_1 = arith.constant 0 : index
    %c0_2 = arith.constant 0 : index
    %c0_3 = arith.constant 0 : index
    %1 = vector.load %arg3[%c0_1, %c0_2, %c0_3] : memref<2x4x4xf32, #tpu.memory_space<vmem>>, vector<1x4x4xf32>
    %2 = vector.shape_cast %1 : vector<1x4x4xf32> to vector<4x4xf32>
    %c0_4 = arith.constant 0 : index
    %c0_5 = arith.constant 0 : index
    %c0_6 = arith.constant 0 : index
    %3 = vector.load %arg1[%c0_4, %c0_5, %c0_6] : memref<2x4x128xf32, #tpu.memory_space<vmem>>, vector<1x4x128xf32>
    %4 = vector.shape_cast %3 : vector<1x4x128xf32> to vector<4x128xf32>
    %5 = vector.extract_strided_slice %4 {offsets = [0, 0], sizes = [1, 128], strides = [1, 1]} : vector<4x128xf32> to vector<1x128xf32>
    %6 = vector.extract_strided_slice %4 {offsets = [1, 0], sizes = [1, 128], strides = [1, 1]} : vector<4x128xf32> to vector<1x128xf32>
    %7 = vector.extract_strided_slice %4 {offsets = [2, 0], sizes = [1, 128], strides = [1, 1]} : vector<4x128xf32> to vector<1x128xf32>
    %8 = vector.extract_strided_slice %4 {offsets = [3, 0], sizes = [1, 128], strides = [1, 1]} : vector<4x128xf32> to vector<1x128xf32>
    %9 = vector.extract_strided_slice %2 {offsets = [0, 0], sizes = [4, 1], strides = [1, 1]} : vector<4x4xf32> to vector<4x1xf32>
    %10 = vector.extract_strided_slice %2 {offsets = [0, 1], sizes = [4, 1], strides = [1, 1]} : vector<4x4xf32> to vector<4x1xf32>
    %11 = vector.extract_strided_slice %2 {offsets = [0, 2], sizes = [4, 1], strides = [1, 1]} : vector<4x4xf32> to vector<4x1xf32>
    %12 = vector.extract_strided_slice %2 {offsets = [0, 3], sizes = [4, 1], strides = [1, 1]} : vector<4x4xf32> to vector<4x1xf32>
    %13 = arith.subf %7, %5 : vector<1x128xf32>
    %14 = arith.subf %8, %6 : vector<1x128xf32>
    %15 = arith.mulf %13, %14 : vector<1x128xf32>
    %16 = arith.subf %11, %9 : vector<4x1xf32>
    %17 = arith.subf %12, %10 : vector<4x1xf32>
    %18 = arith.mulf %16, %17 : vector<4x1xf32>
    %19 = vector.broadcast %7 : vector<1x128xf32> to vector<4x128xf32>
    %20 = vector.broadcast %11 : vector<4x1xf32> to vector<4x128xf32>
    %21 = arith.minimumf %19, %20 : vector<4x128xf32>
    %22 = vector.broadcast %5 : vector<1x128xf32> to vector<4x128xf32>
    %23 = vector.broadcast %9 : vector<4x1xf32> to vector<4x128xf32>
    %24 = arith.maximumf %22, %23 : vector<4x128xf32>
    %25 = arith.subf %21, %24 : vector<4x128xf32>
    %cst = arith.constant 0.000000e+00 : f32
    %26 = vector.broadcast %cst : f32 to vector<4x128xf32>
    %27 = arith.maximumf %25, %26 : vector<4x128xf32>
    %28 = vector.broadcast %8 : vector<1x128xf32> to vector<4x128xf32>
    %29 = vector.broadcast %12 : vector<4x1xf32> to vector<4x128xf32>
    %30 = arith.minimumf %28, %29 : vector<4x128xf32>
    %31 = vector.broadcast %6 : vector<1x128xf32> to vector<4x128xf32>
    %32 = vector.broadcast %10 : vector<4x1xf32> to vector<4x128xf32>
    %33 = arith.maximumf %31, %32 : vector<4x128xf32>
    %34 = arith.subf %30, %33 : vector<4x128xf32>
    %cst_7 = arith.constant 0.000000e+00 : f32
    %35 = vector.broadcast %cst_7 : f32 to vector<4x128xf32>
    %36 = arith.maximumf %34, %35 : vector<4x128xf32>
    %37 = arith.mulf %27, %36 : vector<4x128xf32>
    %38 = vector.broadcast %15 : vector<1x128xf32> to vector<4x128xf32>
    %39 = vector.broadcast %18 : vector<4x1xf32> to vector<4x128xf32>
    %40 = arith.addf %38, %39 : vector<4x128xf32>
    %41 = arith.subf %40, %37 : vector<4x128xf32>
    %42 = arith.divf %37, %41 : vector<4x128xf32>
    %cst_8 = arith.constant dense<0xFF800000> : vector<128xf32>
    %43 = vector.multi_reduction <maximumf>, %42, %cst_8 [0] : vector<4x128xf32> to vector<128xf32>
    %44 = vector.shape_cast %43 : vector<128xf32> to vector<1x128xf32>
    %c0_9 = arith.constant 0 : index
    %c0_10 = arith.constant 0 : index
    %c0_11 = arith.constant 0 : index
    %45 = vector.load %arg4[%c0_9, %c0_10, %c0_11] : memref<2x1x128xf32, #tpu.memory_space<vmem>>, vector<1x1x128xf32>
    %46 = vector.shape_cast %45 : vector<1x1x128xf32> to vector<1x128xf32>
    %47 = vector.shape_cast %44 : vector<1x128xf32> to vector<1x1x128xf32>
    tpu.vector_store %arg4[%c0_9, %c0_10, %c0_11], %47 {strides = array<i32>} : memref<2x1x128xf32, #tpu.memory_space<vmem>>, vector<1x1x128xf32>,
    %48 = vector.extract_strided_slice %0 {offsets = [0, 0], sizes = [1, 128], strides = [1, 1]} : vector<4x128xf32> to vector<1x128xf32>
    %49 = vector.extract_strided_slice %0 {offsets = [1, 0], sizes = [1, 128], strides = [1, 1]} : vector<4x128xf32> to vector<1x128xf32>
    %50 = vector.extract_strided_slice %0 {offsets = [2, 0], sizes = [1, 128], strides = [1, 1]} : vector<4x128xf32> to vector<1x128xf32>
    %51 = vector.extract_strided_slice %0 {offsets = [3, 0], sizes = [1, 128], strides = [1, 1]} : vector<4x128xf32> to vector<1x128xf32>
    %52 = vector.extract_strided_slice %2 {offsets = [0, 0], sizes = [4, 1], strides = [1, 1]} : vector<4x4xf32> to vector<4x1xf32>
    %53 = vector.extract_strided_slice %2 {offsets = [0, 1], sizes = [4, 1], strides = [1, 1]} : vector<4x4xf32> to vector<4x1xf32>
    %54 = vector.extract_strided_slice %2 {offsets = [0, 2], sizes = [4, 1], strides = [1, 1]} : vector<4x4xf32> to vector<4x1xf32>
    %55 = vector.extract_strided_slice %2 {offsets = [0, 3], sizes = [4, 1], strides = [1, 1]} : vector<4x4xf32> to vector<4x1xf32>
    %56 = arith.subf %50, %48 : vector<1x128xf32>
    %57 = arith.subf %51, %49 : vector<1x128xf32>
    %58 = arith.mulf %56, %57 : vector<1x128xf32>
    %59 = arith.subf %54, %52 : vector<4x1xf32>
    %60 = arith.subf %55, %53 : vector<4x1xf32>
    %61 = arith.mulf %59, %60 : vector<4x1xf32>
    %62 = vector.broadcast %50 : vector<1x128xf32> to vector<4x128xf32>
    %63 = vector.broadcast %54 : vector<4x1xf32> to vector<4x128xf32>
    %64 = arith.minimumf %62, %63 : vector<4x128xf32>
    %65 = vector.broadcast %48 : vector<1x128xf32> to vector<4x128xf32>
    %66 = vector.broadcast %52 : vector<4x1xf32> to vector<4x128xf32>
    %67 = arith.maximumf %65, %66 : vector<4x128xf32>
    %68 = arith.subf %64, %67 : vector<4x128xf32>
    %cst_12 = arith.constant 0.000000e+00 : f32
    %69 = vector.broadcast %cst_12 : f32 to vector<4x128xf32>
    %70 = arith.maximumf %68, %69 : vector<4x128xf32>
    %71 = vector.broadcast %51 : vector<1x128xf32> to vector<4x128xf32>
    %72 = vector.broadcast %55 : vector<4x1xf32> to vector<4x128xf32>
    %73 = arith.minimumf %71, %72 : vector<4x128xf32>
    %74 = vector.broadcast %49 : vector<1x128xf32> to vector<4x128xf32>
    %75 = vector.broadcast %53 : vector<4x1xf32> to vector<4x128xf32>
    %76 = arith.maximumf %74, %75 : vector<4x128xf32>
    %77 = arith.subf %73, %76 : vector<4x128xf32>
    %cst_13 = arith.constant 0.000000e+00 : f32
    %78 = vector.broadcast %cst_13 : f32 to vector<4x128xf32>
    %79 = arith.maximumf %77, %78 : vector<4x128xf32>
    %80 = arith.mulf %70, %79 : vector<4x128xf32>
    %81 = vector.broadcast %58 : vector<1x128xf32> to vector<4x128xf32>
    %82 = vector.broadcast %61 : vector<4x1xf32> to vector<4x128xf32>
    %83 = arith.addf %81, %82 : vector<4x128xf32>
    %84 = arith.subf %83, %80 : vector<4x128xf32>
    %85 = arith.divf %80, %84 : vector<4x128xf32>
    %c0_14 = arith.constant 0 : index
    %c0_15 = arith.constant 0 : index
    %c0_16 = arith.constant 0 : index
    %86 = vector.load %arg5[%c0_14, %c0_15, %c0_16] : memref<2x4x128xf32, #tpu.memory_space<vmem>>, vector<1x4x128xf32>
    %87 = vector.shape_cast %86 : vector<1x4x128xf32> to vector<4x128xf32>
    %88 = vector.shape_cast %85 : vector<4x128xf32> to vector<1x4x128xf32>
    tpu.vector_store %arg5[%c0_14, %c0_15, %c0_16], %88 {strides = array<i32>} : memref<2x4x128xf32, #tpu.memory_space<vmem>>, vector<1x4x128xf32>,
    %c1 = arith.constant 1 : index
    %c0_17 = arith.constant 0 : index
    %c0_18 = arith.constant 0 : index
    %89 = vector.load %arg3[%c1, %c0_17, %c0_18] : memref<2x4x4xf32, #tpu.memory_space<vmem>>, vector<1x4x4xf32>
    %90 = vector.shape_cast %89 : vector<1x4x4xf32> to vector<4x4xf32>
    %c1_19 = arith.constant 1 : index
    %c0_20 = arith.constant 0 : index
    %c0_21 = arith.constant 0 : index
    %91 = vector.load %arg1[%c1_19, %c0_20, %c0_21] : memref<2x4x128xf32, #tpu.memory_space<vmem>>, vector<1x4x128xf32>
    %92 = vector.shape_cast %91 : vector<1x4x128xf32> to vector<4x128xf32>
    %93 = vector.extract_strided_slice %92 {offsets = [0, 0], sizes = [1, 128], strides = [1, 1]} : vector<4x128xf32> to vector<1x128xf32>
    %94 = vector.extract_strided_slice %92 {offsets = [1, 0], sizes = [1, 128], strides = [1, 1]} : vector<4x128xf32> to vector<1x128xf32>
    %95 = vector.extract_strided_slice %92 {offsets = [2, 0], sizes = [1, 128], strides = [1, 1]} : vector<4x128xf32> to vector<1x128xf32>
    %96 = vector.extract_strided_slice %92 {offsets = [3, 0], sizes = [1, 128], strides = [1, 1]} : vector<4x128xf32> to vector<1x128xf32>
    %97 = vector.extract_strided_slice %90 {offsets = [0, 0], sizes = [4, 1], strides = [1, 1]} : vector<4x4xf32> to vector<4x1xf32>
    %98 = vector.extract_strided_slice %90 {offsets = [0, 1], sizes = [4, 1], strides = [1, 1]} : vector<4x4xf32> to vector<4x1xf32>
    %99 = vector.extract_strided_slice %90 {offsets = [0, 2], sizes = [4, 1], strides = [1, 1]} : vector<4x4xf32> to vector<4x1xf32>
    %100 = vector.extract_strided_slice %90 {offsets = [0, 3], sizes = [4, 1], strides = [1, 1]} : vector<4x4xf32> to vector<4x1xf32>
    %101 = arith.subf %95, %93 : vector<1x128xf32>
    %102 = arith.subf %96, %94 : vector<1x128xf32>
    %103 = arith.mulf %101, %102 : vector<1x128xf32>
    %104 = arith.subf %99, %97 : vector<4x1xf32>
    %105 = arith.subf %100, %98 : vector<4x1xf32>
    %106 = arith.mulf %104, %105 : vector<4x1xf32>
    %107 = vector.broadcast %95 : vector<1x128xf32> to vector<4x128xf32>
    %108 = vector.broadcast %99 : vector<4x1xf32> to vector<4x128xf32>
    %109 = arith.minimumf %107, %108 : vector<4x128xf32>
    %110 = vector.broadcast %93 : vector<1x128xf32> to vector<4x128xf32>
    %111 = vector.broadcast %97 : vector<4x1xf32> to vector<4x128xf32>
    %112 = arith.maximumf %110, %111 : vector<4x128xf32>
    %113 = arith.subf %109, %112 : vector<4x128xf32>
    %cst_22 = arith.constant 0.000000e+00 : f32
    %114 = vector.broadcast %cst_22 : f32 to vector<4x128xf32>
    %115 = arith.maximumf %113, %114 : vector<4x128xf32>
    %116 = vector.broadcast %96 : vector<1x128xf32> to vector<4x128xf32>
    %117 = vector.broadcast %100 : vector<4x1xf32> to vector<4x128xf32>
    %118 = arith.minimumf %116, %117 : vector<4x128xf32>
    %119 = vector.broadcast %94 : vector<1x128xf32> to vector<4x128xf32>
    %120 = vector.broadcast %98 : vector<4x1xf32> to vector<4x128xf32>
    %121 = arith.maximumf %119, %120 : vector<4x128xf32>
    %122 = arith.subf %118, %121 : vector<4x128xf32>
    %cst_23 = arith.constant 0.000000e+00 : f32
    %123 = vector.broadcast %cst_23 : f32 to vector<4x128xf32>
    %124 = arith.maximumf %122, %123 : vector<4x128xf32>
    %125 = arith.mulf %115, %124 : vector<4x128xf32>
    %126 = vector.broadcast %103 : vector<1x128xf32> to vector<4x128xf32>
    %127 = vector.broadcast %106 : vector<4x1xf32> to vector<4x128xf32>
    %128 = arith.addf %126, %127 : vector<4x128xf32>
    %129 = arith.subf %128, %125 : vector<4x128xf32>
    %130 = arith.divf %125, %129 : vector<4x128xf32>
    %cst_24 = arith.constant dense<0xFF800000> : vector<128xf32>
    %131 = vector.multi_reduction <maximumf>, %130, %cst_24 [0] : vector<4x128xf32> to vector<128xf32>
    %132 = vector.shape_cast %131 : vector<128xf32> to vector<1x128xf32>
    %c1_25 = arith.constant 1 : index
    %c0_26 = arith.constant 0 : index
    %c0_27 = arith.constant 0 : index
    %133 = vector.load %arg4[%c1_25, %c0_26, %c0_27] : memref<2x1x128xf32, #tpu.memory_space<vmem>>, vector<1x1x128xf32>
    %134 = vector.shape_cast %133 : vector<1x1x128xf32> to vector<1x128xf32>
    %135 = vector.shape_cast %132 : vector<1x128xf32> to vector<1x1x128xf32>
    tpu.vector_store %arg4[%c1_25, %c0_26, %c0_27], %135 {strides = array<i32>} : memref<2x1x128xf32, #tpu.memory_space<vmem>>, vector<1x1x128xf32>,
    %136 = vector.extract_strided_slice %0 {offsets = [0, 0], sizes = [1, 128], strides = [1, 1]} : vector<4x128xf32> to vector<1x128xf32>
    %137 = vector.extract_strided_slice %0 {offsets = [1, 0], sizes = [1, 128], strides = [1, 1]} : vector<4x128xf32> to vector<1x128xf32>
    %138 = vector.extract_strided_slice %0 {offsets = [2, 0], sizes = [1, 128], strides = [1, 1]} : vector<4x128xf32> to vector<1x128xf32>
    %139 = vector.extract_strided_slice %0 {offsets = [3, 0], sizes = [1, 128], strides = [1, 1]} : vector<4x128xf32> to vector<1x128xf32>
    %140 = vector.extract_strided_slice %90 {offsets = [0, 0], sizes = [4, 1], strides = [1, 1]} : vector<4x4xf32> to vector<4x1xf32>
    %141 = vector.extract_strided_slice %90 {offsets = [0, 1], sizes = [4, 1], strides = [1, 1]} : vector<4x4xf32> to vector<4x1xf32>
    %142 = vector.extract_strided_slice %90 {offsets = [0, 2], sizes = [4, 1], strides = [1, 1]} : vector<4x4xf32> to vector<4x1xf32>
    %143 = vector.extract_strided_slice %90 {offsets = [0, 3], sizes = [4, 1], strides = [1, 1]} : vector<4x4xf32> to vector<4x1xf32>
    %144 = arith.subf %138, %136 : vector<1x128xf32>
    %145 = arith.subf %139, %137 : vector<1x128xf32>
    %146 = arith.mulf %144, %145 : vector<1x128xf32>
    %147 = arith.subf %142, %140 : vector<4x1xf32>
    %148 = arith.subf %143, %141 : vector<4x1xf32>
    %149 = arith.mulf %147, %148 : vector<4x1xf32>
    %150 = vector.broadcast %138 : vector<1x128xf32> to vector<4x128xf32>
    %151 = vector.broadcast %142 : vector<4x1xf32> to vector<4x128xf32>
    %152 = arith.minimumf %150, %151 : vector<4x128xf32>
    %153 = vector.broadcast %136 : vector<1x128xf32> to vector<4x128xf32>
    %154 = vector.broadcast %140 : vector<4x1xf32> to vector<4x128xf32>
    %155 = arith.maximumf %153, %154 : vector<4x128xf32>
    %156 = arith.subf %152, %155 : vector<4x128xf32>
    %cst_28 = arith.constant 0.000000e+00 : f32
    %157 = vector.broadcast %cst_28 : f32 to vector<4x128xf32>
    %158 = arith.maximumf %156, %157 : vector<4x128xf32>
    %159 = vector.broadcast %139 : vector<1x128xf32> to vector<4x128xf32>
    %160 = vector.broadcast %143 : vector<4x1xf32> to vector<4x128xf32>
    %161 = arith.minimumf %159, %160 : vector<4x128xf32>
    %162 = vector.broadcast %137 : vector<1x128xf32> to vector<4x128xf32>
    %163 = vector.broadcast %141 : vector<4x1xf32> to vector<4x128xf32>
    %164 = arith.maximumf %162, %163 : vector<4x128xf32>
    %165 = arith.subf %161, %164 : vector<4x128xf32>
    %cst_29 = arith.constant 0.000000e+00 : f32
    %166 = vector.broadcast %cst_29 : f32 to vector<4x128xf32>
    %167 = arith.maximumf %165, %166 : vector<4x128xf32>
    %168 = arith.mulf %158, %167 : vector<4x128xf32>
    %169 = vector.broadcast %146 : vector<1x128xf32> to vector<4x128xf32>
    %170 = vector.broadcast %149 : vector<4x1xf32> to vector<4x128xf32>
    %171 = arith.addf %169, %170 : vector<4x128xf32>
    %172 = arith.subf %171, %168 : vector<4x128xf32>
    %173 = arith.divf %168, %172 : vector<4x128xf32>
    %c1_30 = arith.constant 1 : index
    %c0_31 = arith.constant 0 : index
    %c0_32 = arith.constant 0 : index
    %174 = vector.load %arg5[%c1_30, %c0_31, %c0_32] : memref<2x4x128xf32, #tpu.memory_space<vmem>>, vector<1x4x128xf32>
    %175 = vector.shape_cast %174 : vector<1x4x128xf32> to vector<4x128xf32>
    %176 = vector.shape_cast %173 : vector<4x128xf32> to vector<1x4x128xf32>
    tpu.vector_store %arg5[%c1_30, %c0_31, %c0_32], %176 {strides = array<i32>} : memref<2x4x128xf32, #tpu.memory_space<vmem>>, vector<1x4x128xf32>,
    return
  }
  func.func @transform_0(%arg0: i32) -> (i32, i32, i32) {
    %c0_i32 = arith.constant 0 : i32
    %c0_i32_0 = arith.constant 0 : i32
    %c0_i32_1 = arith.constant 0 : i32
    return %c0_i32, %c0_i32_0, %arg0 : i32, i32, i32
  }
  func.func @transform_1(%arg0: i32) -> (i32, i32) {
    %c0_i32 = arith.constant 0 : i32
    %c0_i32_0 = arith.constant 0 : i32
    return %c0_i32, %arg0 : i32, i32
  }
  func.func @transform_2(%arg0: i32) -> (i32, i32, i32) {
    %c0_i32 = arith.constant 0 : i32
    %c0_i32_0 = arith.constant 0 : i32
    %c0_i32_1 = arith.constant 0 : i32
    %c0_i32_2 = arith.constant 0 : i32
    return %c0_i32, %c0_i32_0, %c0_i32_1 : i32, i32, i32
  }
  func.func @transform_3(%arg0: i32) -> (i32, i32, i32) {
    %c0_i32 = arith.constant 0 : i32
    %c0_i32_0 = arith.constant 0 : i32
    %c0_i32_1 = arith.constant 0 : i32
    return %c0_i32, %c0_i32_0, %arg0 : i32, i32, i32
  }
  func.func @transform_4(%arg0: i32) -> (i32, i32, i32) {
    %c0_i32 = arith.constant 0 : i32
    %c0_i32_0 = arith.constant 0 : i32
    %c0_i32_1 = arith.constant 0 : i32
    return %c0_i32, %c0_i32_0, %arg0 : i32, i32, i32
  }
}

</mosaic_0001>

<llo_original>
// kernel: tpu_custom_call.1
$region0: #{tpu_custom_call.1}
  #allocation0 [shape = 'u32[]', space=smem, size = 0x4, offset = 0x4, fixed_abs, tag = 'smem constant byte address 0x4 - core index']
  #allocation1 [shape = 'u32[144,128]{1,0:T(1,128)}', space=vmem, size = 0x12000, scoped, tag = 'internal scratch']
  %s0 = inlined_call_operand.hbm [shape: f32[2,4,128], index: 0, kind: input, shape index: {}]
  %s1 = inlined_call_operand.hbm [shape: f32[4,128], index: 1, kind: input, shape index: {}]
  %s2 = inlined_call_operand.hbm [shape: f32[2,4,4], index: 2, kind: input, shape index: {}]
  %s3 = inlined_call_operand.hbm [shape: f32[2,1,128], index: 3, kind: output, shape index: {0}]
  %s4 = inlined_call_operand.hbm [shape: f32[2,4,128], index: 4, kind: output, shape index: {1}]
  %5 = xla_tuple %s3, %s4
  %s6 = sld [smem:[#allocation0]]
  $region42: #{tpu_custom_call.1} parent=0
    _
  %s8 = ssub.s32 1, %s6
  %s9 = scalar_select 0, %s8, %s6
  $region1: #{tpu_custom_call.1} parent=0
    #allocation2 [shape = 'u8[4096]{0}', space=vmem, size = 0x1000, scoped, tag = 'input window, operand 0, single buffered']
    #allocation3 [shape = 's32[1]{0}', space=sflag, size = 0x4, scoped, tag = 'scoped memory for tpu_custom_call.1']
    #allocation4 [shape = 's32[1]{0}', space=sflag, size = 0x4, scoped, tag = 'scoped memory for tpu_custom_call.1']
    #allocation5 [shape = 'u8[2048]{0}', space=vmem, size = 0x800, scoped, tag = 'input window, operand 1, single buffered']
    #allocation6 [shape = 's32[1]{0}', space=sflag, size = 0x4, scoped, tag = 'scoped memory for tpu_custom_call.1']
    #allocation7 [shape = 'u8[4096]{0}', space=vmem, size = 0x1000, scoped, tag = 'input window, operand 2, single buffered']
    #allocation8 [shape = 'u8[1024]{0}', space=vmem, size = 0x400, scoped, tag = 'output window, operand 0, single buffered']
    #allocation9 [shape = 'u8[4096]{0}', space=vmem, size = 0x1000, scoped, tag = 'output window, operand 1, single buffered']
    #allocation10 [shape = 's32[1]{0}', space=sflag, size = 0x4, scoped, tag = 'scoped memory for tpu_custom_call.1']
    %10 = vsyncpa [#allocation3], 0
    %11 = vsyncpa [#allocation6], 0
    %12 = vsyncpa [#allocation4], 0
    %13 = vsyncpa [#allocation10], 0
    // Predicated region
    $region2: #{tpu_custom_call.1} parent=1 // pred_check
      _
    $region3: #{tpu_custom_call.1} parent=1 // pred_check_branch
      %15 = sbr.rel (0) target = $region5
    $region4: #{tpu_custom_call.1} parent=1 // pred_region
      %s17 = ssub.s32 128, 128
      %18 = vsyncadd [#allocation3], %s17
      %s19 = sshll.u32 [#allocation2], 4
      %s20 = int_to_ptr.vmem [resolvable:$true] %s19
      %25 = dma.hbm_to_vmem [thread:$0]  %s0, 128, %s20, [#allocation3], 64, 64, 4
    $region5: #{tpu_custom_call.1} parent=1 // pred_fallthru
      _
    // Predicated region
    $region6: #{tpu_custom_call.1} parent=1 // pred_check
      _
    $region7: #{tpu_custom_call.1} parent=1 // pred_check_branch
      %27 = sbr.rel (0) target = $region9
    $region8: #{tpu_custom_call.1} parent=1 // pred_region
      %s29 = ssub.s32 64, 64
      %30 = vsyncadd [#allocation6], %s29
      %s32 = sshll.u32 [#allocation5], 4
      %s33 = int_to_ptr.vmem [resolvable:$true] %s32
      %35 = dma.hbm_to_vmem [thread:$0]  %s1, 64, %s33, [#allocation6]
    $region9: #{tpu_custom_call.1} parent=1 // pred_fallthru
      _
    // Predicated region
    $region10: #{tpu_custom_call.1} parent=1 // pred_check
      _
    $region11: #{tpu_custom_call.1} parent=1 // pred_check_branch
      %37 = sbr.rel (0) target = $region13
    $region12: #{tpu_custom_call.1} parent=1 // pred_region
      %s39 = ssub.s32 128, 128
      %40 = vsyncadd [#allocation6], %s39
      %s41 = sshll.u32 [#allocation7], 4
      %s42 = int_to_ptr.vmem [resolvable:$true] %s41
      %47 = dma.hbm_to_vmem [thread:$0]  %s2, 128, %s42, [#allocation6], 64, 64, 4
    $region13: #{tpu_custom_call.1} parent=1 // pred_fallthru
      _
    // Predicated region
    $region14: #{tpu_custom_call.1} parent=1 // pred_check
      _
    $region15: #{tpu_custom_call.1} parent=1 // pred_check_branch
      %49 = sbr.rel (0) target = $region17
    $region16: #{tpu_custom_call.1} parent=1 // pred_region
      %50 = dma.done [#allocation3], 128
    $region17: #{tpu_custom_call.1} parent=1 // pred_fallthru
      _
    // Predicated region
    $region18: #{tpu_custom_call.1} parent=1 // pred_check
      _
    $region19: #{tpu_custom_call.1} parent=1 // pred_check_branch
      %52 = sbr.rel (0) target = $region21
    $region20: #{tpu_custom_call.1} parent=1 // pred_region
      %53 = dma.done [#allocation6], 64
    $region21: #{tpu_custom_call.1} parent=1 // pred_fallthru
      _
    // Predicated region
    $region22: #{tpu_custom_call.1} parent=1 // pred_check
      _
    $region23: #{tpu_custom_call.1} parent=1 // pred_check_branch
      %55 = sbr.rel (0) target = $region25
    $region24: #{tpu_custom_call.1} parent=1 // pred_region
      %56 = dma.done [#allocation6], 128
    $region25: #{tpu_custom_call.1} parent=1 // pred_fallthru
      _
    %v57 = vld [vmem:[#allocation5] sm:$0xf]
    %v58 = vld [vmem:[#allocation7] sm:$0xf]
    %v59 = vld [vmem:[#allocation2] sm:$0xf]
    %v61 = vrot.slane %v59, 6
    %v63 = vsub.f32 %v59, %v61
    %v65 = vrot.slane %v63, 1
    %v67 = vmul.f32 %v63, %v65
    %69 = vrot.lane.b32.xlu0 %v58, 2
    %v70 = vpop.permute.xlu0 %69
    %v72 = vsub.f32 %v58, %v70
    %74 = vrot.lane.b32.xlu0 %v72, 127
    %v75 = vpop.permute.xlu0 %74
    %v77 = vmul.f32 %v72, %v75
    %v78 = vlaneseq
    %v79 = vshrl.u32 %v78, 7
    %v80 = vsub.s32 2, %v79
    %v81 = vrot.slane %v59, %v80
    %82 = vset.pattern.permute.xlu0 2
    %83 = vperm.xlu0 %82, %v58
    %v84 = vpop.permute.xlu0 %83
    %v86 = vmin.f32 %v81, %v84
    %v87 = vlaneseq
    %v88 = vshrl.u32 %v87, 7
    %v89 = vsub.s32 0, %v88
    %v90 = vrot.slane %v59, %v89
    %91 = vset.pattern.permute.xlu0 0
    %92 = vperm.xlu0 %91, %v58
    %v93 = vpop.permute.xlu0 %92
    %v95 = vmax.f32 %v90, %v93
    %v96 = vsub.f32 %v86, %v95
    %v97 = vmax.f32 %v96, 0.0
    %v98 = vlaneseq
    %v99 = vshrl.u32 %v98, 7
    %v100 = vsub.s32 3, %v99
    %v101 = vrot.slane %v59, %v100
    %102 = vset.pattern.permute.xlu0 3
    %103 = vperm.xlu0 %102, %v58
    %v104 = vpop.permute.xlu0 %103
    %v106 = vmin.f32 %v101, %v104
    %v107 = vlaneseq
    %v108 = vshrl.u32 %v107, 7
    %v109 = vsub.s32 1, %v108
    %v110 = vrot.slane %v59, %v109
    %111 = vset.pattern.permute.xlu0 1
    %112 = vperm.xlu0 %111, %v58
    %v113 = vpop.permute.xlu0 %112
    %v115 = vmax.f32 %v110, %v113
    %v116 = vsub.f32 %v106, %v115
    %v117 = vmax.f32 %v116, 0.0
    %v118 = vmul.f32 %v97, %v117
    %v119 = vlaneseq
    %v120 = vshrl.u32 %v119, 7
    %v121 = vsub.s32 2, %v120
    %v122 = vrot.slane %v67, %v121
    %124 = vset.pattern.permute.xlu0 2
    %125 = vperm.xlu0 %124, %v77
    %v126 = vpop.permute.xlu0 %125
    %v128 = vadd.f32 %v122, %v126
    %v129 = vsub.f32 %v128, %v118
    %v130 = vrcp.pop %v129
    %v131 = vmul.f32 %v118, %v130
    %vm132 = vcmask 1043456
    %v133 = vsel %vm132, %v131, -inf
    %v134 = vrot.slane %v133, 4
    %v135 = vmax.f32 %v133, %v134
    %v136 = vrot.slane %v135, 2
    %v137 = vmax.f32 %v135, %v136
    %v138 = vrot.slane %v137, 1
    %v139 = vmax.f32 %v137, %v138
    %140 = vst [vmem:[#allocation8] sm:$0x1] %v139
    %v142 = vrot.slane %v57, 6
    %v144 = vsub.f32 %v57, %v142
    %v146 = vrot.slane %v144, 1
    %v148 = vmul.f32 %v144, %v146
    %v149 = vlaneseq
    %v150 = vshrl.u32 %v149, 7
    %v151 = vsub.s32 2, %v150
    %v152 = vrot.slane %v57, %v151
    %v153 = vmin.f32 %v152, %v84
    %v154 = vlaneseq
    %v155 = vshrl.u32 %v154, 7
    %v156 = vsub.s32 0, %v155
    %v157 = vrot.slane %v57, %v156
    %v158 = vmax.f32 %v157, %v93
    %v159 = vsub.f32 %v153, %v158
    %v160 = vmax.f32 %v159, 0.0
    %v161 = vlaneseq
    %v162 = vshrl.u32 %v161, 7
    %v163 = vsub.s32 3, %v162
    %v164 = vrot.slane %v57, %v163
    %v165 = vmin.f32 %v164, %v104
    %v166 = vlaneseq
    %v167 = vshrl.u32 %v166, 7
    %v168 = vsub.s32 1, %v167
    %v169 = vrot.slane %v57, %v168
    %v170 = vmax.f32 %v169, %v113
    %v171 = vsub.f32 %v165, %v170
    %v172 = vmax.f32 %v171, 0.0
    %v173 = vmul.f32 %v160, %v172
    %v174 = vlaneseq
    %v175 = vshrl.u32 %v174, 7
    %v176 = vsub.s32 2, %v175
    %v177 = vrot.slane %v148, %v176
    %v178 = vadd.f32 %v177, %v126
    %v179 = vsub.f32 %v178, %v173
    %v180 = vrcp.pop %v179
    %v181 = vmul.f32 %v173, %v180
    %182 = vst [vmem:[#allocation9] sm:$0xf] %v181
    %s183 = scalar_lea.vmem [#allocation7], 4
    %v184 = vld [vmem:[%s183] sm:$0xf]
    %s185 = scalar_lea.vmem [#allocation2], 4
    %v186 = vld [vmem:[%s185] sm:$0xf]
    %v188 = vrot.slane %v186, 6
    %v190 = vsub.f32 %v186, %v188
    %v192 = vrot.slane %v190, 1
    %v194 = vmul.f32 %v190, %v192
    %196 = vrot.lane.b32.xlu0 %v184, 2
    %v197 = vpop.permute.xlu0 %196
    %v199 = vsub.f32 %v184, %v197
    %201 = vrot.lane.b32.xlu0 %v199, 127
    %v202 = vpop.permute.xlu0 %201
    %v204 = vmul.f32 %v199, %v202
    %v205 = vlaneseq
    %v206 = vshrl.u32 %v205, 7
    %v207 = vsub.s32 2, %v206
    %v208 = vrot.slane %v186, %v207
    %209 = vset.pattern.permute.xlu0 2
    %210 = vperm.xlu0 %209, %v184
    %v211 = vpop.permute.xlu0 %210
    %v213 = vmin.f32 %v208, %v211
    %v214 = vlaneseq
    %v215 = vshrl.u32 %v214, 7
    %v216 = vsub.s32 0, %v215
    %v217 = vrot.slane %v186, %v216
    %218 = vset.pattern.permute.xlu0 0
    %219 = vperm.xlu0 %218, %v184
    %v220 = vpop.permute.xlu0 %219
    %v222 = vmax.f32 %v217, %v220
    %v223 = vsub.f32 %v213, %v222
    %v224 = vmax.f32 %v223, 0.0
    %v225 = vlaneseq
    %v226 = vshrl.u32 %v225, 7
    %v227 = vsub.s32 3, %v226
    %v228 = vrot.slane %v186, %v227
    %229 = vset.pattern.permute.xlu0 3
    %230 = vperm.xlu0 %229, %v184
    %v231 = vpop.permute.xlu0 %230
    %v233 = vmin.f32 %v228, %v231
    %v234 = vlaneseq
    %v235 = vshrl.u32 %v234, 7
    %v236 = vsub.s32 1, %v235
    %v237 = vrot.slane %v186, %v236
    %238 = vset.pattern.permute.xlu0 1
    %239 = vperm.xlu0 %238, %v184
    %v240 = vpop.permute.xlu0 %239
    %v242 = vmax.f32 %v237, %v240
    %v243 = vsub.f32 %v233, %v242
    %v244 = vmax.f32 %v243, 0.0
    %v245 = vmul.f32 %v224, %v244
    %v246 = vlaneseq
    %v247 = vshrl.u32 %v246, 7
    %v248 = vsub.s32 2, %v247
    %v249 = vrot.slane %v194, %v248
    %251 = vset.pattern.permute.xlu0 2
    %252 = vperm.xlu0 %251, %v204
    %v253 = vpop.permute.xlu0 %252
    %v255 = vadd.f32 %v249, %v253
    %v256 = vsub.f32 %v255, %v245
    %v257 = vrcp.pop %v256
    %v258 = vmul.f32 %v245, %v257
    %v259 = vsel %vm132, %v258, -inf
    %v260 = vrot.slane %v259, 4
    %v261 = vmax.f32 %v259, %v260
    %v262 = vrot.slane %v261, 2
    %v263 = vmax.f32 %v261, %v262
    %v264 = vrot.slane %v263, 1
    %v265 = vmax.f32 %v263, %v264
    %s266 = scalar_lea.vmem [#allocation8], 1
    %267 = vst [vmem:[%s266] sm:$0x1] %v265
    %v268 = vmin.f32 %v152, %v211
    %v269 = vmax.f32 %v157, %v220
    %v270 = vsub.f32 %v268, %v269
    %v271 = vmax.f32 %v270, 0.0
    %v272 = vmin.f32 %v164, %v231
    %v273 = vmax.f32 %v169, %v240
    %v274 = vsub.f32 %v272, %v273
    %v275 = vmax.f32 %v274, 0.0
    %v276 = vmul.f32 %v271, %v275
    %v277 = vadd.f32 %v177, %v253
    %v278 = vsub.f32 %v277, %v276
    %v279 = vrcp.pop %v278
    %v280 = vmul.f32 %v276, %v279
    %s281 = scalar_lea.vmem [#allocation9], 4
    %282 = vst [vmem:[%s281] sm:$0xf] %v280
    // Predicated region
    $region26: #{tpu_custom_call.1} parent=1 // pred_check
      _
    $region27: #{tpu_custom_call.1} parent=1 // pred_check_branch
      %284 = sbr.rel (0) target = $region29
    $region28: #{tpu_custom_call.1} parent=1 // pred_region
      %s286 = ssub.s32 32, 32
      %287 = vsyncadd [#allocation4], %s286
      %s288 = sshll.u32 [#allocation8], 4
      %s289 = int_to_ptr.vmem [resolvable:$true] %s288
      %294 = dma.vmem_to_hbm [thread:$0]  %s289, 32, %s3, [#allocation4], 16, 16, 1
    $region29: #{tpu_custom_call.1} parent=1 // pred_fallthru
      _
    // Predicated region
    $region30: #{tpu_custom_call.1} parent=1 // pred_check
      _
    $region31: #{tpu_custom_call.1} parent=1 // pred_check_branch
      %296 = sbr.rel (0) target = $region33
    $region32: #{tpu_custom_call.1} parent=1 // pred_region
      %s298 = ssub.s32 128, 128
      %299 = vsyncadd [#allocation10], %s298
      %s300 = sshll.u32 [#allocation9], 4
      %s301 = int_to_ptr.vmem [resolvable:$true] %s300
      %306 = dma.vmem_to_hbm [thread:$0]  %s301, 128, %s4, [#allocation10], 64, 64, 4
    $region33: #{tpu_custom_call.1} parent=1 // pred_fallthru
      _
    // Predicated region
    $region34: #{tpu_custom_call.1} parent=1 // pred_check
      _
    $region35: #{tpu_custom_call.1} parent=1 // pred_check_branch
      %308 = sbr.rel (0) target = $region37
    $region36: #{tpu_custom_call.1} parent=1 // pred_region
      %309 = dma.done [#allocation4], 32
    $region37: #{tpu_custom_call.1} parent=1 // pred_fallthru
      _
    // Predicated region
    $region38: #{tpu_custom_call.1} parent=1 // pred_check
      _
    $region39: #{tpu_custom_call.1} parent=1 // pred_check_branch
      %311 = sbr.rel (0) target = $region41
    $region40: #{tpu_custom_call.1} parent=1 // pred_region
      %312 = dma.done [#allocation10], 128
    $region41: #{tpu_custom_call.1} parent=1 // pred_fallthru
      _
    %313 = vsyncpa [#allocation3], 1
    %314 = vsyncpa [#allocation6], 1
    %315 = vsyncpa [#allocation4], 1
    %316 = vsyncpa [#allocation10], 1

</llo_original>
